<compile_context>
chip_gen: v7x
topology: tpu7x:2x2x1
jax: 0.10.0
libtpu: 0.0.40
codegen_flags: <defaults>
</compile_context>

<pallas_src>
import jax
import jax.numpy as jnp
from jax.experimental import pallas as pl
from jax.experimental.pallas import tpu as pltpu


def _round_up(x, m):
    return (x + m - 1) // m * m


def _vmem_capacity_bytes():
    """Physical VMEM per TensorCore (v5e/v6e: 128 MiB, v7x: 64 MiB)."""
    try:
        cap = int(pltpu.get_tpu_info().vmem_capacity_bytes)
        if cap > 0:
            return cap
    except Exception:
        pass
    return 64 << 20  # conservative fallback (v7x-sized)


def _plan_tiles(B, Dp, in_bytes, out_bytes, budget):
    """Pick (TB, TN, weight_buffers) from a DMA-volume target + VMEM budget."""
    target = 4 << 20  # ~4 MiB of activation per grid step amortizes ~0.35us/step

    def ws(tb, tn, wbufs):
        return (2 * tb * Dp * in_bytes        # x tile, double-buffered
                + 2 * tb * tn * out_bytes     # out tile, double-buffered
                + wbufs * tn * Dp * in_bytes)  # selected weight block

    def pick_tb(tn, wbufs):
        tb = max(8, _round_up(target // max(Dp * in_bytes, 1), 8))
        if B > 16:
            # Keep >= 2 batch tiles so v7x's two TensorCores both get work.
            tb = min(tb, _round_up(-(-B // 2), 8))
        while tb > 8 and ws(tb, tn, wbufs) > budget:
            tb = max(8, _round_up(tb // 2, 8))
        # A block equal to the full batch dim is always legal; otherwise tb is
        # a multiple of 8 and edge blocks are masked by Pallas.
        return min(tb, B)

    # Preferred: keep the whole selected weight resident, single-buffered
    # (its block index is constant across the grid).
    tn, wbufs = Dp, 1
    tb = pick_tb(tn, wbufs)
    if ws(tb, tn, wbufs) > budget and Dp > 256:
        # Weight too large to stay resident: tile output columns instead and
        # double-buffer the weight blocks along the n axis.
        wbufs = 2
        tn = 256
        while tn * 2 <= Dp and ws(pick_tb(tn * 2, wbufs), tn * 2, wbufs) <= budget:
            tn *= 2
        while tn > 128 and ws(pick_tb(tn, wbufs), tn, wbufs) > budget:
            tn //= 2
        tb = pick_tb(tn, wbufs)
    return tb, tn, wbufs, ws(tb, tn, wbufs)


def _conv1x1_kernel(pos_ref, x_ref, w_ref, o_ref):
    """One grid step = one (batch tile, output-column tile).

    pos_ref: (1,) int32 in SMEM  (scalar prefetch; consumed by the index_map)
    x_ref:   (TB, Dp)            activation tile (full contracting dim)
    w_ref:   (1, TN, Dp)         rows [n*TN, (n+1)*TN) of weight_all[position]
    o_ref:   (TB, TN)            output tile
    """
    del pos_ref  # only used by the weight BlockSpec index_map
    x = x_ref[...]
    w = w_ref[0]
    # y = x @ W.T without materializing a transpose: contract the lane dims.
    y = jax.lax.dot_general(
        x, w,
        dimension_numbers=(((1,), (1,)), ((), ())),
        preferred_element_type=jnp.float32,
    )
    o_ref[...] = y.astype(o_ref.dtype)


def dynamic_invertible_conv1x1(x, weight_all, position, *, compute_dtype=None):
    """y = x @ weight_all[position].T  (forward of DynamicInvertibleConv1x1).

    x:            (B, D)
    weight_all:   (P, D, D) stacked orthogonal weights
    position:     int / int32 scalar in [0, P)
    compute_dtype: optional MXU operand dtype (e.g. jnp.bfloat16). Default None
                   keeps x.dtype and adds no extra cast / HBM pass.
    """
    B, D = x.shape
    P, d0, d1 = weight_all.shape
    assert d0 == D and d1 == D, "weight_all must be (num_positions, dim, dim)"
    assert P >= 1, "need at least one position"

    out_dtype = x.dtype
    cdtype = jnp.dtype(compute_dtype) if compute_dtype is not None else jnp.dtype(x.dtype)
    in_bytes = cdtype.itemsize
    out_bytes = jnp.dtype(out_dtype).itemsize

    Dp = _round_up(D, 128)

    capacity = _vmem_capacity_bytes()
    budget = capacity // 2  # leave headroom for compiler-internal scratch
    TB, TN, wbufs, working_set = _plan_tiles(B, Dp, in_bytes, out_bytes, budget)

    grid_b = pl.cdiv(B, TB)
    grid_n = pl.cdiv(Dp, TN)

    # Host-side zero padding only when the feature dim is not lane-aligned;
    # zero contracting lanes on both operands keep the dot exact.  The common
    # D % 128 == 0 case passes x/weights straight through (no extra HBM pass)
    # and the batch remainder is handled by Pallas edge-block masking.
    x_p = x if Dp == D else jnp.pad(x, ((0, 0), (0, Dp - D)))
    w_p = weight_all if Dp == D else jnp.pad(weight_all,
                                             ((0, 0), (0, Dp - D), (0, Dp - D)))
    if x_p.dtype != cdtype:
        x_p = x_p.astype(cdtype)
    if w_p.dtype != cdtype:
        w_p = w_p.astype(cdtype)

    pos = jnp.asarray(position, dtype=jnp.int32).reshape((1,))

    vmem_limit = int(min(max(working_set + (8 << 20), 32 << 20),
                         (capacity * 4) // 5))

    grid_spec = pltpu.PrefetchScalarGridSpec(
        num_scalar_prefetch=1,
        grid=(grid_b, grid_n),
        in_specs=[
            # x tile: constant along the n axis, so the pipeline fetches it
            # once per batch tile.
            pl.BlockSpec((TB, Dp), lambda b, n, pos_ref: (b, 0)),
            # Selected weight block; single-buffered when fully resident
            # (block index never changes), double-buffered when N-tiled.
            pl.BlockSpec((1, TN, Dp),
                         lambda b, n, pos_ref: (pos_ref[0], n, 0),
                         pipeline_mode=pl.Buffered(wbufs)),
        ],
        out_specs=pl.BlockSpec((TB, TN), lambda b, n, pos_ref: (b, n)),
    )

    y = pl.pallas_call(
        _conv1x1_kernel,
        out_shape=jax.ShapeDtypeStruct((B, Dp), out_dtype),
        grid_spec=grid_spec,
        compiler_params=pltpu.CompilerParams(
            dimension_semantics=("parallel", "parallel"),
            vmem_limit_bytes=vmem_limit,
        ),
        cost_estimate=pl.CostEstimate(
            flops=2 * B * D * D,
            bytes_accessed=B * Dp * (in_bytes + out_bytes) + Dp * Dp * in_bytes,
            transcendentals=0,
        ),
    )(pos, x_p, w_p)

    return y if Dp == D else y[:, :D]


def init_weights(key, dim, num_positions):
    """Per-position orthogonal init: QR of a random normal (matches torch init)."""
    ws = []
    for i in range(num_positions):
        k = jax.random.fold_in(key, i)
        w = jax.random.normal(k, (dim, dim), dtype=jnp.float32)
        q, _ = jnp.linalg.qr(w)
        ws.append(q)
    return jnp.stack(ws, axis=0)  # (P, D, D)


def reference_forward(x, weight_all, position):
    return x @ weight_all[position].T


# TODO(synk): inverse(), log_det() and step() (matrix inverse, determinant,
# position-buffer mutation) are host/XLA-side module bookkeeping, not part of
# the forward pass, so they are not implemented as Pallas kernels.


if __name__ == "__main__":
    key = jax.random.PRNGKey(0)

    # Case 1: module-like small shapes (dim=32 -> lane-padded weight path).
    batch, dim, num_positions, position = 8, 32, 6, 2
    kx, kw = jax.random.split(key)
    x = jax.random.normal(kx, (batch, dim), dtype=jnp.float32)
    weight_all = init_weights(kw, dim, num_positions)

    y = jax.block_until_ready(
        dynamic_invertible_conv1x1(x, weight_all, position))
    y_ref = reference_forward(x, weight_all, position)
    assert y.shape == (batch, dim)
    assert jnp.allclose(y, y_ref, atol=1e-4, rtol=1e-4), "mismatch vs reference (case 1)"

    # Case 2: lane-aligned dim + ragged batch (zero-copy fast path; exercises
    # the edge-block masking and the >= 2 batch tiles for megacore sharding).
    batch2, dim2, P2, pos2 = 20, 128, 3, 1
    kx2, kw2 = jax.random.split(jax.random.fold_in(key, 1))
    x2 = jax.random.normal(kx2, (batch2, dim2), dtype=jnp.float32)
    w2 = init_weights(kw2, dim2, P2)

    y2 = jax.block_until_ready(dynamic_invertible_conv1x1(x2, w2, pos2))
    y2_ref = reference_forward(x2, w2, pos2)
    assert y2.shape == (batch2, dim2)
    assert jnp.allclose(y2, y2_ref, atol=1e-4, rtol=1e-4), "mismatch vs reference (case 2)"

    print("KERNEL_OK")
</pallas_src>

<mosaic_0001>
module attributes {stable_mosaic.version = 11 : i64} {
  func.func @_conv1x1_kernel(%arg0: i32, %arg1: i32, %arg2: memref<1xi32, #tpu.memory_space<smem>>, %arg3: memref<8x128xf32, #tpu.memory_space<vmem>>, %arg4: memref<1x128x128xf32, #tpu.memory_space<vmem>>, %arg5: memref<8x128xf32, #tpu.memory_space<vmem>>) attributes {dimension_semantics = [#tpu.dimension_semantics<parallel>, #tpu.dimension_semantics<parallel>], iteration_bounds = array<i64: 1, 1>, scalar_prefetch = 1 : i64, scratch_operands = 0 : i64, tpu.core_type = #tpu.core_type<tc>, window_params = [{transform_indices = @transform_0, window_bounds = array<i64: 8, 128>}, {pipeline_mode = #tpu.pipeline_mode<synchronous>, transform_indices = @transform_1, window_bounds = array<i64: 1, 128, 128>}, {transform_indices = @transform_2, window_bounds = array<i64: 8, 128>}]} {
    %c0 = arith.constant 0 : index
    %c0_0 = arith.constant 0 : index
    %0 = vector.load %arg3[%c0, %c0_0] : memref<8x128xf32, #tpu.memory_space<vmem>>, vector<8x128xf32>
    %c0_1 = arith.constant 0 : index
    %c0_2 = arith.constant 0 : index
    %c0_3 = arith.constant 0 : index
    %1 = vector.load %arg4[%c0_1, %c0_2, %c0_3] : memref<1x128x128xf32, #tpu.memory_space<vmem>>, vector<1x128x128xf32>
    %2 = vector.shape_cast %1 : vector<1x128x128xf32> to vector<128x128xf32>
    %cst = arith.constant dense<0.000000e+00> : vector<8x128xf32>
    %3 = tpu.matmul %0, %2, %cst {dimension_numbers = #tpu.dot_dimension_numbers<[1], [1], [0], [0], [0, 0, 1, 0], [], []>} : vector<8x128xf32>, vector<128x128xf32>, vector<8x128xf32> -> vector<8x128xf32>
    %c0_4 = arith.constant 0 : index
    %c0_5 = arith.constant 0 : index
    %4 = vector.load %arg5[%c0_4, %c0_5] : memref<8x128xf32, #tpu.memory_space<vmem>>, vector<8x128xf32>
    tpu.vector_store %arg5[%c0_4, %c0_5], %3 {strides = array<i32>} : memref<8x128xf32, #tpu.memory_space<vmem>>, vector<8x128xf32>,
    return
  }
  func.func @transform_0(%arg0: i32, %arg1: i32, %arg2: memref<1xi32, #tpu.memory_space<smem>>) -> (i32, i32) {
    %c0_i32 = arith.constant 0 : i32
    %c0_i32_0 = arith.constant 0 : i32
    return %arg0, %c0_i32 : i32, i32
  }
  func.func @transform_1(%arg0: i32, %arg1: i32, %arg2: memref<1xi32, #tpu.memory_space<smem>>) -> (i32, i32, i32) {
    %c0 = arith.constant 0 : index
    %0 = memref.load %arg2[%c0] : memref<1xi32, #tpu.memory_space<smem>>
    %c0_i32 = arith.constant 0 : i32
    %c0_i32_0 = arith.constant 0 : i32
    return %0, %arg1, %c0_i32 : i32, i32, i32
  }
  func.func @transform_2(%arg0: i32, %arg1: i32, %arg2: memref<1xi32, #tpu.memory_space<smem>>) -> (i32, i32) {
    %c0_i32 = arith.constant 0 : i32
    return %arg0, %arg1 : i32, i32
  }
}

</mosaic_0001>

<llo_original>
// kernel: tpu_custom_call.1
$region0: #{tpu_custom_call.1}
  #allocation0 [shape = 'u32[]', space=smem, size = 0x4, offset = 0x4, fixed_abs, tag = 'smem constant byte address 0x4 - core index']
  #allocation1 [shape = 'u32[144,128]{1,0:T(1,128)}', space=vmem, size = 0x12000, scoped, tag = 'internal scratch']
  #allocation2 [shape = 's32[1]{0}', space=sflag, size = 0x4, scoped, tag = 'scoped memory for tpu_custom_call.1']
  #allocation3 [shape = 's32[1]{0:T(128)S(6)}', space=smem, size = 0x200, scoped, tag = 'prefetched SMEM operand 0']
  %s0 = inlined_call_operand.<no memory space> [shape: s32[1], index: 0, kind: input, shape index: {}]
  %s1 = inlined_call_operand.hbm [shape: f32[8,128], index: 1, kind: input, shape index: {}]
  %s2 = inlined_call_operand.hbm [shape: f32[6,128,128], index: 2, kind: input, shape index: {}]
  %s3 = inlined_call_operand.hbm [shape: f32[8,128], index: 3, kind: output, shape index: {}]
  %s4 = sld [smem:[#allocation0]]
  $region26: #{tpu_custom_call.1} parent=0
    _
  %s6 = ssub.s32 1, %s4
  %s7 = scalar_select 0, %s6, %s4
  %8 = sst [smem:[#allocation3]] %s0
  $region1: #{tpu_custom_call.1} parent=0
    #allocation4 [shape = 'u8[4096]{0}', space=vmem, size = 0x1000, scoped, tag = 'input window, operand 1, single buffered']
    #allocation5 [shape = 's32[1]{0}', space=sflag, size = 0x4, scoped, tag = 'scoped memory for tpu_custom_call.1']
    #allocation6 [shape = 's32[1]{0}', space=sflag, size = 0x4, scoped, tag = 'scoped memory for tpu_custom_call.1']
    #allocation7 [shape = 'u8[65536]{0}', space=vmem, size = 0x10000, scoped, tag = 'input window, operand 2, single buffered']
    #allocation8 [shape = 's32[1]{0}', space=sflag, size = 0x4, scoped, tag = 'scoped memory for tpu_custom_call.1']
    #allocation9 [shape = 'u8[4096]{0}', space=vmem, size = 0x1000, scoped, tag = 'output window, operand 0, single buffered']
    %9 = vsyncpa [#allocation5], 0
    %10 = vsyncpa [#allocation8], 0
    %11 = vsyncpa [#allocation6], 0
    // Predicated region
    $region2: #{tpu_custom_call.1} parent=1 // pred_check
      _
    $region3: #{tpu_custom_call.1} parent=1 // pred_check_branch
      %13 = sbr.rel (0) target = $region5
    $region4: #{tpu_custom_call.1} parent=1 // pred_region
      %s15 = ssub.s32 128, 128
      %16 = vsyncadd [#allocation5], %s15
      %s18 = sshll.u32 [#allocation4], 4
      %s19 = int_to_ptr.vmem [resolvable:$true] %s18
      %21 = dma.hbm_to_vmem [thread:$0]  %s1, 128, %s19, [#allocation5]
    $region5: #{tpu_custom_call.1} parent=1 // pred_fallthru
      _
    // Predicated region
    $region6: #{tpu_custom_call.1} parent=1 // pred_check
      _
    $region7: #{tpu_custom_call.1} parent=1 // pred_check_branch
      %23 = sbr.rel (0) target = $region9
    $region8: #{tpu_custom_call.1} parent=1 // pred_region
      %s24 = sld [smem:[#allocation3]]
      %s26 = ssub.s32 2048, 2048
      %27 = vsyncadd [#allocation8], %s26
      %s28 = smul.addr %s24, 16
      %s29 = smul.addr %s28, 128
      %s30 = scalar_lea.hbm %s2, %s29
      %s31 = sshll.u32 [#allocation7], 4
      %s32 = int_to_ptr.vmem [resolvable:$true] %s31
      %37 = dma.hbm_to_vmem [thread:$0]  %s30, 2048, %s32, [#allocation8], 128, 128, 8
    $region9: #{tpu_custom_call.1} parent=1 // pred_fallthru
      _
    // Predicated region
    $region10: #{tpu_custom_call.1} parent=1 // pred_check
      _
    $region11: #{tpu_custom_call.1} parent=1 // pred_check_branch
      %39 = sbr.rel (0) target = $region13
    $region12: #{tpu_custom_call.1} parent=1 // pred_region
      %40 = dma.done [#allocation5], 128
    $region13: #{tpu_custom_call.1} parent=1 // pred_fallthru
      _
    // Predicated region
    $region14: #{tpu_custom_call.1} parent=1 // pred_check
      _
    $region15: #{tpu_custom_call.1} parent=1 // pred_check_branch
      %42 = sbr.rel (0) target = $region17
    $region16: #{tpu_custom_call.1} parent=1 // pred_region
      %43 = dma.done [#allocation8], 2048
    $region17: #{tpu_custom_call.1} parent=1 // pred_fallthru
      _
    %s44 = sld [smem:[#allocation3]]
    %v45 = vld [vmem:[#allocation4] sm:$0xff]
    %v46 = vld [vmem:[#allocation7] sm:$0xff]
    %v47 = vld [vmem:[#allocation7 + $0x8] sm:$0xff]
    %v48 = vld [vmem:[#allocation7 + $0x10] sm:$0xff]
    %v49 = vld [vmem:[#allocation7 + $0x18] sm:$0xff]
    %v50 = vld [vmem:[#allocation7 + $0x20] sm:$0xff]
    %v51 = vld [vmem:[#allocation7 + $0x28] sm:$0xff]
    %v52 = vld [vmem:[#allocation7 + $0x30] sm:$0xff]
    %v53 = vld [vmem:[#allocation7 + $0x38] sm:$0xff]
    %v54 = vld [vmem:[#allocation7 + $0x40] sm:$0xff]
    %v55 = vld [vmem:[#allocation7 + $0x48] sm:$0xff]
    %v56 = vld [vmem:[#allocation7 + $0x50] sm:$0xff]
    %v57 = vld [vmem:[#allocation7 + $0x58] sm:$0xff]
    %v58 = vld [vmem:[#allocation7 + $0x60] sm:$0xff]
    %v59 = vld [vmem:[#allocation7 + $0x68] sm:$0xff]
    %v60 = vld [vmem:[#allocation7 + $0x70] sm:$0xff]
    %v61 = vld [vmem:[#allocation7 + $0x78] sm:$0xff]
    %62 = vmatprep.subr.mxu0 0.0
    %63 = vmatpush1.xpose.msra.mxu0 %v46
    %64 = vmatprep.subr.mxu0 0.0
    %65 = vmatpush1.xpose.msra.mxu0 %v47
    %66 = vmatprep.subr.mxu0 0.0
    %67 = vmatpush1.xpose.msra.mxu0 %v48
    %68 = vmatprep.subr.mxu0 0.0
    %69 = vmatpush1.xpose.msra.mxu0 %v49
    %70 = vmatprep.subr.mxu0 0.0
    %71 = vmatpush1.xpose.msra.mxu0 %v50
    %72 = vmatprep.subr.mxu0 0.0
    %73 = vmatpush1.xpose.msra.mxu0 %v51
    %74 = vmatprep.subr.mxu0 0.0
    %75 = vmatpush1.xpose.msra.mxu0 %v52
    %76 = vmatprep.subr.mxu0 0.0
    %77 = vmatpush1.xpose.msra.mxu0 %v53
    %78 = vmatprep.subr.mxu0 0.0
    %79 = vmatpush1.xpose.msra.mxu0 %v54
    %80 = vmatprep.subr.mxu0 0.0
    %81 = vmatpush1.xpose.msra.mxu0 %v55
    %82 = vmatprep.subr.mxu0 0.0
    %83 = vmatpush1.xpose.msra.mxu0 %v56
    %84 = vmatprep.subr.mxu0 0.0
    %85 = vmatpush1.xpose.msra.mxu0 %v57
    %86 = vmatprep.subr.mxu0 0.0
    %87 = vmatpush1.xpose.msra.mxu0 %v58
    %88 = vmatprep.subr.mxu0 0.0
    %89 = vmatpush1.xpose.msra.mxu0 %v59
    %90 = vmatprep.subr.mxu0 0.0
    %91 = vmatpush1.xpose.msra.mxu0 %v60
    %92 = vmatprep.subr.mxu0 0.0
    %93 = vmatpush1.xpose.msra.mxu0 %v61
    %94 = vmatprep.subr.mxu0 0.0
    %95 = vmatpush1.xpose.msra.mxu0 0.0
    %96 = vmatprep.subr.mxu0 0.0
    %97 = vmatpush1.xpose.msra.mxu0 0.0
    %98 = vmatprep.subr.mxu0 0.0
    %99 = vmatpush1.xpose.msra.mxu0 0.0
    %100 = vmatprep.subr.mxu0 0.0
    %101 = vmatpush1.xpose.msra.mxu0 0.0
    %102 = vmatprep.subr.mxu0 0.0
    %103 = vmatpush1.xpose.msra.mxu0 0.0
    %104 = vmatprep.subr.mxu0 0.0
    %105 = vmatpush1.xpose.msra.mxu0 0.0
    %106 = vmatprep.subr.mxu0 0.0
    %107 = vmatpush1.xpose.msra.mxu0 0.0
    %108 = vmatprep.subr.mxu0 0.0
    %109 = vmatpush1.xpose.msra.mxu0 0.0
    %110 = vmatprep.subr.mxu0 0.0
    %111 = vmatpush1.xpose.msra.mxu0 0.0
    %112 = vmatprep.subr.mxu0 0.0
    %113 = vmatpush1.xpose.msra.mxu0 0.0
    %114 = vmatprep.subr.mxu0 0.0
    %115 = vmatpush1.xpose.msra.mxu0 0.0
    %116 = vmatprep.subr.mxu0 0.0
    %117 = vmatpush1.xpose.msra.mxu0 0.0
    %118 = vmatprep.subr.mxu0 0.0
    %119 = vmatpush1.xpose.msra.mxu0 0.0
    %120 = vmatprep.subr.mxu0 0.0
    %121 = vmatpush1.xpose.msra.mxu0 0.0
    %122 = vmatprep.subr.mxu0 0.0
    %123 = vmatpush1.xpose.msra.mxu0 0.0
    %124 = vmatprep.subr.mxu0 0.0
    %125 = vmatpush1.xpose.msra.mxu0 0.0
    %126 = vmatprep.mubr.f32.mxu0 0.0
    %127 = vmatmul.mubr.f32.gmra.mrb[0].mxu0 %v45
    %v128 = vpop.f32.mrb[0].mxu0
    %v129 = vadd.f32 0.0, %v128
    %v130 = vpop.f32.mrb[0].mxu0
    %131 = vdwg.mxu0
    %132 = vst [vmem:[#allocation9] sm:$0xff] %v129
    // Predicated region
    $region18: #{tpu_custom_call.1} parent=1 // pred_check
      _
    $region19: #{tpu_custom_call.1} parent=1 // pred_check_branch
      %134 = sbr.rel (0) target = $region21
    $region20: #{tpu_custom_call.1} parent=1 // pred_region
      %s136 = ssub.s32 128, 128
      %137 = vsyncadd [#allocation6], %s136
      %s139 = sshll.u32 [#allocation9], 4
      %s140 = int_to_ptr.vmem [resolvable:$true] %s139
      %142 = dma.vmem_to_hbm [thread:$0]  %s140, 128, %s3, [#allocation6]
    $region21: #{tpu_custom_call.1} parent=1 // pred_fallthru
      _
    // Predicated region
    $region22: #{tpu_custom_call.1} parent=1 // pred_check
      _
    $region23: #{tpu_custom_call.1} parent=1 // pred_check_branch
      %144 = sbr.rel (0) target = $region25
    $region24: #{tpu_custom_call.1} parent=1 // pred_region
      %145 = dma.done [#allocation6], 128
    $region25: #{tpu_custom_call.1} parent=1 // pred_fallthru
      _
    %146 = vsyncpa [#allocation5], 1
    %147 = vsyncpa [#allocation8], 1
    %148 = vsyncpa [#allocation6], 1

</llo_original>
